<compile_context>
chip_gen: v6e
topology: v6e:2x2x1
jax: 0.10.0
libtpu: 0.0.40
codegen_flags: <defaults>
</compile_context>

<pallas_src>
import functools
import math

import numpy as np
import jax
import jax.numpy as jnp
from jax.experimental import pallas as pl
from jax.experimental.pallas import tpu as pltpu

F32 = jnp.float32
BF16 = jnp.bfloat16
_VMEM_LIMIT = 32 * 1024 * 1024   # <= 48 MiB keeps headroom on v7x's 64 MiB VMEM


def _round_up(x, m):
    return ((x + m - 1) // m) * m


def _pick_tile(n):
    """Node-axis padding + largest tile in {512,256,128} dividing it."""
    n_pad = _round_up(max(n, 1), 128)
    for t in (512, 256, 128):
        if n_pad % t == 0:
            return n_pad, t
    return n_pad, 128


# ---------------------------------------------------------------------------
# Kernel 1: GCN aggregation  out = PReLU( A_hat @ H + b )      (H = X @ W hoisted)
#   grid = (row_tiles, k_tiles); f32 accumulator scratch; bias+PReLU fused epilogue.
# ---------------------------------------------------------------------------
def _gcn_agg_kernel(a_ref, h_ref, b_ref, o_ref, acc_ref, *, alpha):
    k = pl.program_id(1)

    @pl.when(k == 0)
    def _():
        acc_ref[...] = jnp.zeros_like(acc_ref)

    acc_ref[...] += jnp.dot(a_ref[...], h_ref[...],
                            preferred_element_type=jnp.float32)

    @pl.when(k == pl.num_programs(1) - 1)
    def _():
        out = acc_ref[...] + b_ref[...]
        o_ref[...] = jnp.where(out > 0.0, out, alpha * out).astype(o_ref.dtype)


def gcn_layer(a_p, n, n_pad, ta, x, w, b, alpha, out_dtype):
    """One GCN layer: hoisted H = X @ W (plain jnp, tiny dims), Pallas aggregation."""
    h = jnp.dot(x.astype(F32), jnp.asarray(w, F32))              # (n, h_feat) f32
    h_feat = h.shape[1]
    h_p = jnp.pad(h, ((0, n_pad - n), (0, 0))).astype(BF16)      # node-axis pad only
    b_row = jnp.asarray(b, F32).reshape(1, h_feat)

    out = pl.pallas_call(
        functools.partial(_gcn_agg_kernel, alpha=float(alpha)),
        out_shape=jax.ShapeDtypeStruct((n_pad, h_feat), out_dtype),
        grid=(n_pad // ta, n_pad // ta),
        in_specs=[
            pl.BlockSpec((ta, ta), lambda i, k: (i, k)),         # A_hat tile (bf16)
            pl.BlockSpec((ta, h_feat), lambda i, k: (k, 0)),     # H node tile (bf16)
            pl.BlockSpec((1, h_feat), lambda i, k: (0, 0)),      # bias (resident)
        ],
        out_specs=pl.BlockSpec((ta, h_feat), lambda i, k: (i, 0)),
        scratch_shapes=[pltpu.VMEM((ta, h_feat), F32)],
        compiler_params=pltpu.CompilerParams(
            dimension_semantics=("parallel", "arbitrary"),
            vmem_limit_bytes=_VMEM_LIMIT),
    )(a_p, h_p, b_row)
    return out[:n]


# ---------------------------------------------------------------------------
# Kernel 2: fused projection head + L2 normalization (bf16 output)
#   out = normalize( ELU(z @ W1 + b1) @ W2 + b2 )   for both views in one call.
# ---------------------------------------------------------------------------
def _proj_norm_kernel(z_ref, w1_ref, b1_ref, w2_ref, b2_ref, o_ref):
    t = jnp.dot(z_ref[0], w1_ref[...], preferred_element_type=jnp.float32)
    t = t + b1_ref[...]
    # ELU with clamped exp (no inf on the discarded positive branch)
    t = jnp.where(t > 0.0, t, jnp.exp(jnp.minimum(t, 0.0)) - 1.0)
    h = jnp.dot(t.astype(BF16), w2_ref[...],
                preferred_element_type=jnp.float32) + b2_ref[...]
    nrm = jnp.maximum(jnp.sqrt(jnp.sum(h * h, axis=1, keepdims=True)), 1e-12)
    o_ref[...] = ((h / nrm).astype(o_ref.dtype))[None]


def projection_normalized(zst, w1, b1, w2, b2, tm):
    """zst: (2, n_pad, h_in) bf16, node axis already padded to a multiple of tm."""
    _, n_pad, h_in = zst.shape
    p = w1.shape[1]
    h_out = w2.shape[1]
    w1_b = jnp.asarray(w1, F32).astype(BF16)
    b1_r = jnp.asarray(b1, F32).reshape(1, p)
    w2_b = jnp.asarray(w2, F32).astype(BF16)
    b2_r = jnp.asarray(b2, F32).reshape(1, h_out)

    return pl.pallas_call(
        _proj_norm_kernel,
        out_shape=jax.ShapeDtypeStruct((2, n_pad, h_out), BF16),
        grid=(2, n_pad // tm),
        in_specs=[
            pl.BlockSpec((1, tm, h_in), lambda b, i: (b, i, 0)),
            pl.BlockSpec((h_in, p), lambda b, i: (0, 0)),
            pl.BlockSpec((1, p), lambda b, i: (0, 0)),
            pl.BlockSpec((p, h_out), lambda b, i: (0, 0)),
            pl.BlockSpec((1, h_out), lambda b, i: (0, 0)),
        ],
        out_specs=pl.BlockSpec((1, tm, h_out), lambda b, i: (b, i, 0)),
        compiler_params=pltpu.CompilerParams(
            dimension_semantics=("parallel", "parallel"),
            vmem_limit_bytes=_VMEM_LIMIT),
    )(zst.astype(BF16), w1_b, b1_r, w2_b, b2_r)


# ---------------------------------------------------------------------------
# Kernel 3: streaming team-up / InfoNCE row losses (both directions batched)
#
#   exp((s + g*cs_i + g*cs_j)/tau) = c_i * c_j * exp(s/tau),  c = exp(g*(cs-max)/tau)
#   loss_i = -log( c_i*exp(d12_i/tau)
#                  / ( sum_j c_j*(exp(s11_ij/tau)+exp(s12_ij/tau)) - c_i*exp(1/tau) ) )
#   Inputs are pre-normalized bf16; denominator streamed into a lane-parallel
#   (t,128) f32 scratch; single cross-lane reduce in the epilogue.
# ---------------------------------------------------------------------------
def _team_up_kernel(rows_ref, cols_ref, cw_ref, ci_ref, num_ref, o_ref, acc_ref,
                    *, inv_tau, e_refl_diag):
    kk = pl.program_id(2)

    @pl.when(kk == 0)
    def _():
        acc_ref[...] = jnp.zeros_like(acc_ref)

    rows = rows_ref[0]                                  # (tq, d) bf16, normalized
    dn = (((1,), (1,)), ((), ()))                       # contract feature dims
    s0 = jax.lax.dot_general(rows, cols_ref[0], dn,
                             preferred_element_type=jnp.float32)   # refl / between
    s1 = jax.lax.dot_general(rows, cols_ref[1], dn,
                             preferred_element_type=jnp.float32)
    e2 = (jnp.exp(s0 * inv_tau) + jnp.exp(s1 * inv_tau)) * cw_ref[...]   # (tq, tk)

    tk = e2.shape[1]
    acc = acc_ref[...]
    for c in range(tk // 128):                          # lane-parallel partial sums
        acc = acc + e2[:, c * 128:(c + 1) * 128]
    acc_ref[...] = acc

    @pl.when(kk == pl.num_programs(2) - 1)
    def _():
        denom = jnp.sum(acc_ref[...], axis=1, keepdims=True)       # one XLU reduce
        denom = jnp.maximum(denom - ci_ref[...] * e_refl_diag, 1e-30)
        num = jnp.maximum(num_ref[...], 1e-30)
        o_ref[...] = (jnp.log(denom) - jnp.log(num))[None]         # -log(num/denom)


def team_up_losses_both(hn, cs, gamma, tau, n, t):
    """hn: (2, n_pad, d) bf16 L2-normalized projections (view 0 = h1, view 1 = h2)."""
    _, n_pad, d = hn.shape
    hn_f = hn.astype(F32)
    d12 = jnp.sum(hn_f[0] * hn_f[1], axis=1, keepdims=True)        # (n_pad, 1)

    cs = jnp.asarray(cs, F32)
    cw = jnp.exp((gamma / tau) * (cs - jnp.max(cs)))               # max-shift cancels
    cw_col = jnp.pad(cw.reshape(1, n), ((0, 0), (0, n_pad - n)))   # 0 kills padded cols
    ci_row = jnp.pad(cw.reshape(n, 1), ((0, n_pad - n), (0, 0)))   # 0 in padded rows
    num_row = ci_row * jnp.exp(d12 / tau)

    inv_tau = 1.0 / float(tau)
    out = pl.pallas_call(
        functools.partial(_team_up_kernel, inv_tau=inv_tau,
                          e_refl_diag=float(math.exp(inv_tau))),
        out_shape=jax.ShapeDtypeStruct((2, n_pad, 1), F32),
        grid=(2, n_pad // t, n_pad // t),
        in_specs=[
            pl.BlockSpec((1, t, d), lambda b, i, k: (b, i, 0)),    # row tile (view b)
            pl.BlockSpec((2, t, d), lambda b, i, k: (0, k, 0)),    # col tile (BOTH views)
            pl.BlockSpec((1, t), lambda b, i, k: (0, k)),          # col weights c_j
            pl.BlockSpec((t, 1), lambda b, i, k: (i, 0)),          # row weights c_i
            pl.BlockSpec((t, 1), lambda b, i, k: (i, 0)),          # precomputed numerator
        ],
        out_specs=pl.BlockSpec((1, t, 1), lambda b, i, k: (b, i, 0)),
        scratch_shapes=[pltpu.VMEM((t, 128), F32)],
        compiler_params=pltpu.CompilerParams(
            dimension_semantics=("parallel", "parallel", "arbitrary"),
            vmem_limit_bytes=_VMEM_LIMIT),
    )(hn, hn, cw_col, ci_row, num_row)
    return out[0, :n, 0], out[1, :n, 0]


# ---------------------------------------------------------------------------
# Tiny losses: plain jnp (launch-overhead bound per review item 10)
# ---------------------------------------------------------------------------
def _spatial_penalty_jnp(z1, z2, c1, c2, eps=1e-6):
    zd = jnp.sqrt(jnp.sum((z1 - z2 + eps) ** 2, axis=1))
    sd = jnp.sqrt(jnp.sum((c1 - c2 + eps) ** 2, axis=1))
    zd = zd / jnp.maximum(jnp.max(zd), 1e-12)
    sd = sd / jnp.maximum(jnp.max(sd), 1e-12)
    return jnp.mean((1.0 - zd) * sd)


def _triplet_total_jnp(a, p, n_, margin=2.0, eps=1e-6):
    pd = jnp.sqrt(jnp.sum((a - p + eps) ** 2, axis=1))
    nd = jnp.sqrt(jnp.sum((a - n_ + eps) ** 2, axis=1))
    return jnp.sum(jnp.maximum(pd - nd + margin, 0.0))


# ---------------------------------------------------------------------------
# The model
# ---------------------------------------------------------------------------
class TacosPallas:
    def __init__(self, Y, coord, n_list, D, edge_list, edge_weight, node_cs,
                 edge_subset_sz=64, spatial_regularization=0.9,
                 latent_dimension=16, num_proj_hidden=256, lamb=0.1, seed=0):
        self.Y = jnp.asarray(Y, F32)
        self.coord = jnp.asarray(coord, F32)
        self.n_list = list(n_list)
        self.N1 = n_list[0]
        self.N2 = sum(n_list[1:])
        self.N = sum(n_list)
        self.D = D
        self.lamb = lamb
        self.latent_dimension = latent_dimension
        self.spatial_regularization = spatial_regularization
        self.edge_subset_sz = edge_subset_sz
        self.node_cs = jnp.asarray(node_cs, F32)

        # edge data kept on device -> no per-forward host sync (review item 11)
        el = np.asarray(edge_list)
        self._edge_src = jnp.asarray(el[0], jnp.int32)
        self._edge_tgt = jnp.asarray(el[1], jnp.int32)
        self._edge_w = jnp.asarray(edge_weight, F32)

        # CSGCL hyperparameters (mirroring the PyTorch constructor)
        self.tau = 0.6
        self.t0 = 1000
        self.gamma_max = 10
        self.ced_drop_rate_1 = 0.2
        self.ced_drop_rate_2 = 0.7
        self.cav_drop_rate_1 = 0.1
        self.cav_drop_rate_2 = 0.2
        self.ced_thr = 1.0
        self.cav_thr = 1.0

        # tiling for the node axis (shared by GCN aggregation, projection, loss)
        self._n_pad, self._ta = _pick_tile(self.N)
        self._t_loss = self._ta

        # cached padded bf16 A_hat for the un-augmented view (built once, on device)
        self._a_p_main = self._build_a_hat_padded(
            jnp.ones_like(self._edge_w))

        # deterministic parameter init
        h = latent_dimension
        key = jax.random.PRNGKey(seed + 1234)
        k = jax.random.split(key, 6)

        def glorot(kk, shape):
            s = np.sqrt(6.0 / (shape[0] + shape[1]))
            return jax.random.uniform(kk, shape, F32, -s, s)

        # Encoder: GCNConv(D, 2h) -> PReLU -> GCNConv(2h, h) -> PReLU
        self.W1 = glorot(k[0], (D, 2 * h))
        self.b1 = jnp.zeros((2 * h,), F32)
        self.W2 = glorot(k[1], (2 * h, h))
        self.b2 = jnp.zeros((h,), F32)
        self.prelu = 0.25  # nn.PReLU() default init
        # CSGCL projection head
        self.fc1_w = glorot(k[2], (h, num_proj_hidden))
        self.fc1_b = jnp.zeros((num_proj_hidden,), F32)
        self.fc2_w = glorot(k[3], (num_proj_hidden, h))
        self.fc2_b = jnp.zeros((h,), F32)

    # --- dense gcn_norm adjacency built on device from an edge keep-mask ---
    def _build_a_hat_padded(self, keep):
        n = self.N
        A = jnp.zeros((n, n), F32).at[self._edge_tgt, self._edge_src].set(keep)
        A = A + jnp.eye(n, dtype=F32)                       # self loops
        deg = jnp.sum(A, axis=1)
        dinv = jnp.where(deg > 0.0, jax.lax.rsqrt(jnp.maximum(deg, 1e-12)), 0.0)
        a_hat = dinv[:, None] * A * dinv[None, :]
        pad = self._n_pad - n
        return jnp.pad(a_hat, ((0, pad), (0, pad))).astype(BF16)

    # --- CSGCL encoder: 2 GCN layers (hoisted X@W + fused aggregation kernel) ---
    def _encode(self, x, a_p, out_dtype=F32):
        h = gcn_layer(a_p, self.N, self._n_pad, self._ta,
                      x, self.W1, self.b1, self.prelu, BF16)     # bf16 intermediate
        h = gcn_layer(a_p, self.N, self._n_pad, self._ta,
                      h, self.W2, self.b2, self.prelu, out_dtype)
        return h

    # --- community-strength edge dropping (ced): device-side keep-mask ---
    def _ced_keep(self, p, threshold, key):
        w = self._edge_w
        w = w / jnp.mean(w) * (1.0 - p)
        w = jnp.where(w > 1.0 - threshold, w, 1.0 - threshold)
        w = jnp.minimum(w, 1.0)
        return jax.random.bernoulli(key, w).astype(F32)

    # --- community-strength attribute voting (cav): pure jnp, no host sync ---
    def _cav(self, feature, node_cs, p, max_threshold, key):
        x_abs = jnp.abs(feature)
        w = x_abs.T @ node_cs
        w = jnp.where(w == 0.0, jnp.max(w), w)
        w = jnp.log(w)
        w = (jnp.max(w) - w) / (jnp.max(w) - jnp.min(w))
        w = w / jnp.mean(w) * p
        w = jnp.minimum(w, max_threshold)
        w = jnp.maximum(w, 0.0)
        drop = jax.random.bernoulli(key, w)
        return jnp.where(drop[None, :], 0.0, feature)

    # --- forward ---
    def forward(self, epoch, sub_graph, key):
        keys = jax.random.split(key, 16)
        kidx = 0

        z = self._encode(self.Y, self._a_p_main, out_dtype=F32)   # (N, h) f32

        # ----- spatial regularization penalty (plain jnp; tiny subsets) -----
        penalty = jnp.float32(0.0)
        if self.spatial_regularization != 0:
            flag = 0
            for n in self.n_list:
                slicez = z[flag:flag + n]
                coord_i = self.coord[flag:flag + n]
                flag += n
                idx11 = jax.random.randint(keys[kidx], (self.edge_subset_sz,), 0, n); kidx += 1
                idx21 = jax.random.randint(keys[kidx], (self.edge_subset_sz,), 0, n); kidx += 1
                # NOTE: mirrors the PyTorch source, which indexes coord with
                # cell_random_subset_11 for BOTH c11 and c21.
                penalty = penalty + _spatial_penalty_jnp(
                    slicez[idx11], slicez[idx21], coord_i[idx11], coord_i[idx11])

        # ----- cross-slice triplet loss (plain jnp) -----
        cross_slice = jnp.float32(0.0)
        if self.lamb != 0:
            nz = np.argwhere(np.asarray(sub_graph) != 0)           # host data, no sync
            a_idx = jnp.asarray(nz[:, 0], jnp.int32)
            p_idx = jnp.asarray(nz[:, 1], jnp.int32)
            slicez1 = z[:self.N1]
            slicez2 = z[self.N1:]
            n_idx = jax.random.randint(keys[kidx], (nz.shape[0],), 0, self.N1); kidx += 1
            cross_slice = _triplet_total_jnp(
                slicez1[a_idx], slicez2[p_idx], slicez1[n_idx]) / nz.shape[0]

        # ----- CSGCL contrastive (team-up) loss -----
        keep1 = self._ced_keep(self.ced_drop_rate_1, self.ced_thr, keys[kidx]); kidx += 1
        keep2 = self._ced_keep(self.ced_drop_rate_2, self.ced_thr, keys[kidx]); kidx += 1
        a_p1 = self._build_a_hat_padded(keep1)
        a_p2 = self._build_a_hat_padded(keep2)
        x1 = self._cav(self.Y, self.node_cs, self.cav_drop_rate_1, self.cav_thr, keys[kidx]); kidx += 1
        x2 = self._cav(self.Y, self.node_cs, self.cav_drop_rate_2, self.cav_thr, keys[kidx]); kidx += 1
        z1 = self._encode(x1, a_p1, out_dtype=BF16)
        z2 = self._encode(x2, a_p2, out_dtype=BF16)

        # stacked (2, n_pad, h) bf16 -> fused projection + normalize -> team-up loss
        zst = jnp.stack([z1, z2])
        zst = jnp.pad(zst, ((0, 0), (0, self._n_pad - self.N), (0, 0)))
        hn = projection_normalized(zst, self.fc1_w, self.fc1_b,
                                   self.fc2_w, self.fc2_b, self._t_loss)

        gamma = float(min(max(0.0, (epoch - self.t0) / 100.0), self.gamma_max))
        l1, l2 = team_up_losses_both(hn, self.node_cs, gamma, self.tau,
                                     self.N, self._t_loss)
        base_loss = jnp.mean((l1 + l2) * 0.5)

        loss = base_loss
        if self.spatial_regularization != 0:
            loss = loss + self.spatial_regularization * penalty
        if self.lamb != 0:
            loss = loss + self.lamb * cross_slice
        return loss, z


# ---------------------------------------------------------------------------
if __name__ == "__main__":
    key = jax.random.PRNGKey(0)
    k_y, k_c, k_w, k_cs, k_run = jax.random.split(key, 5)

    n_list = [8, 8]
    N = sum(n_list)
    D = 32
    hidden = 16

    Y = jax.random.normal(k_y, (N, D), F32)
    coord = jax.random.uniform(k_c, (N, 2), F32) * 10.0

    # symmetric ring graph per slice (stands in for graph_alpha's spatial graph)
    edges = []
    flag = 0
    for n in n_list:
        for i in range(n):
            a, b = flag + i, flag + (i + 1) % n
            edges.append((a, b))
            edges.append((b, a))
        flag += n
    edge_list = np.asarray(edges, np.int64).T          # (2, E)
    E = edge_list.shape[1]
    edge_weight = np.asarray(jax.random.uniform(k_w, (E,), F32)) * 0.8 + 0.2
    node_cs = np.asarray(jax.random.uniform(k_cs, (N,), F32)) + 0.1

    model = TacosPallas(Y, coord, n_list, D, edge_list, edge_weight, node_cs,
                        edge_subset_sz=64, spatial_regularization=0.9,
                        latent_dimension=hidden, num_proj_hidden=256,
                        lamb=0.1, seed=0)

    sub_graph = np.eye(n_list[0], n_list[1], dtype=np.float32)  # (N1, N2) alignment graph

    loss, z = model.forward(epoch=1100, sub_graph=sub_graph, key=k_run)
    jax.block_until_ready((loss, z))

    assert z.shape == (N, hidden)
    assert bool(jnp.isfinite(loss))
    print("KERNEL_OK")
</pallas_src>

<mosaic_0001>
module attributes {stable_mosaic.version = 11 : i64} {
  func.func @_gcn_agg_kernel(%arg0: i32, %arg1: i32, %arg2: memref<128x128xbf16, #tpu.memory_space<vmem>>, %arg3: memref<128x32xbf16, #tpu.memory_space<vmem>>, %arg4: memref<1x32xf32, #tpu.memory_space<vmem>>, %arg5: memref<128x32xbf16, #tpu.memory_space<vmem>>, %arg6: memref<128x32xf32, #tpu.memory_space<vmem>>) attributes {dimension_semantics = [#tpu.dimension_semantics<parallel>, #tpu.dimension_semantics<arbitrary>], iteration_bounds = array<i64: 1, 1>, scalar_prefetch = 0 : i64, scratch_operands = 1 : i64, tpu.core_type = #tpu.core_type<tc>, window_params = [{transform_indices = @transform_0, window_bounds = array<i64: 128, 128>}, {transform_indices = @transform_1, window_bounds = array<i64: 128, 32>}, {pipeline_mode = #tpu.pipeline_mode<synchronous>, transform_indices = @transform_2, window_bounds = array<i64: 1, 32>}, {transform_indices = @transform_3, window_bounds = array<i64: 128, 32>}]} {
    %c0_i32 = arith.constant 0 : i32
    %0 = arith.cmpi eq, %arg1, %c0_i32 : i32
    %1 = arith.extui %0 : i1 to i32
    %c0_i32_0 = arith.constant 0 : i32
    %2 = arith.cmpi ne, %1, %c0_i32_0 : i32
    scf.if %2 {
      %cst_10 = arith.constant 0.000000e+00 : f32
      %12 = vector.broadcast %cst_10 : f32 to vector<128x32xf32>
      %c0_11 = arith.constant 0 : index
      %c0_12 = arith.constant 0 : index
      %13 = vector.load %arg6[%c0_11, %c0_12] : memref<128x32xf32, #tpu.memory_space<vmem>>, vector<128x32xf32>
      tpu.vector_store %arg6[%c0_11, %c0_12], %12 {strides = array<i32>} : memref<128x32xf32, #tpu.memory_space<vmem>>, vector<128x32xf32>,
    } else {
    }
    %c0 = arith.constant 0 : index
    %c0_1 = arith.constant 0 : index
    %3 = vector.load %arg6[%c0, %c0_1] : memref<128x32xf32, #tpu.memory_space<vmem>>, vector<128x32xf32>
    %c0_2 = arith.constant 0 : index
    %c0_3 = arith.constant 0 : index
    %4 = vector.load %arg2[%c0_2, %c0_3] : memref<128x128xbf16, #tpu.memory_space<vmem>>, vector<128x128xbf16>
    %c0_4 = arith.constant 0 : index
    %c0_5 = arith.constant 0 : index
    %5 = vector.load %arg3[%c0_4, %c0_5] : memref<128x32xbf16, #tpu.memory_space<vmem>>, vector<128x32xbf16>
    %cst = arith.constant dense<0.000000e+00> : vector<128x32xf32>
    %6 = tpu.matmul %4, %5, %cst {dimension_numbers = #tpu.dot_dimension_numbers<[1], [0], [0], [1], [0, 0, 1, 1], [], []>} : vector<128x128xbf16>, vector<128x32xbf16>, vector<128x32xf32> -> vector<128x32xf32>
    %7 = arith.addf %3, %6 : vector<128x32xf32>
    %c0_6 = arith.constant 0 : index
    %c0_7 = arith.constant 0 : index
    %8 = vector.load %arg6[%c0_6, %c0_7] : memref<128x32xf32, #tpu.memory_space<vmem>>, vector<128x32xf32>
    tpu.vector_store %arg6[%c0_6, %c0_7], %7 {strides = array<i32>} : memref<128x32xf32, #tpu.memory_space<vmem>>, vector<128x32xf32>,
    %c0_i32_8 = arith.constant 0 : i32
    %9 = arith.cmpi eq, %arg1, %c0_i32_8 : i32
    %10 = arith.extui %9 : i1 to i32
    %c0_i32_9 = arith.constant 0 : i32
    %11 = arith.cmpi ne, %10, %c0_i32_9 : i32
    scf.if %11 {
      %c0_10 = arith.constant 0 : index
      %c0_11 = arith.constant 0 : index
      %12 = vector.load %arg6[%c0_10, %c0_11] : memref<128x32xf32, #tpu.memory_space<vmem>>, vector<128x32xf32>
      %c0_12 = arith.constant 0 : index
      %c0_13 = arith.constant 0 : index
      %13 = vector.load %arg4[%c0_12, %c0_13] : memref<1x32xf32, #tpu.memory_space<vmem>>, vector<1x32xf32>
      %14 = vector.broadcast %13 : vector<1x32xf32> to vector<128x32xf32>
      %15 = arith.addf %12, %14 : vector<128x32xf32>
      %cst_14 = arith.constant 0.000000e+00 : f32
      %16 = vector.broadcast %cst_14 : f32 to vector<128x32xf32>
      %17 = arith.cmpf ogt, %15, %16 : vector<128x32xf32>
      %cst_15 = arith.constant 2.500000e-01 : f32
      %18 = vector.broadcast %cst_15 : f32 to vector<128x32xf32>
      %19 = arith.mulf %18, %15 : vector<128x32xf32>
      %20 = arith.select %17, %15, %19 : vector<128x32xi1>, vector<128x32xf32>
      %21 = arith.truncf %20 : vector<128x32xf32> to vector<128x32xbf16>
      %c0_16 = arith.constant 0 : index
      %c0_17 = arith.constant 0 : index
      %22 = vector.load %arg5[%c0_16, %c0_17] : memref<128x32xbf16, #tpu.memory_space<vmem>>, vector<128x32xbf16>
      tpu.vector_store %arg5[%c0_16, %c0_17], %21 {strides = array<i32>} : memref<128x32xbf16, #tpu.memory_space<vmem>>, vector<128x32xbf16>,
    } else {
    }
    return
  }
  func.func @transform_0(%arg0: i32, %arg1: i32) -> (i32, i32) {
    %c0_i32 = arith.constant 0 : i32
    return %arg0, %arg1 : i32, i32
  }
  func.func @transform_1(%arg0: i32, %arg1: i32) -> (i32, i32) {
    %c0_i32 = arith.constant 0 : i32
    %c0_i32_0 = arith.constant 0 : i32
    return %arg1, %c0_i32 : i32, i32
  }
  func.func @transform_2(%arg0: i32, %arg1: i32) -> (i32, i32) {
    %c0_i32 = arith.constant 0 : i32
    %c0_i32_0 = arith.constant 0 : i32
    %c0_i32_1 = arith.constant 0 : i32
    return %c0_i32, %c0_i32_0 : i32, i32
  }
  func.func @transform_3(%arg0: i32, %arg1: i32) -> (i32, i32) {
    %c0_i32 = arith.constant 0 : i32
    %c0_i32_0 = arith.constant 0 : i32
    return %arg0, %c0_i32 : i32, i32
  }
}

</mosaic_0001>

<llo_original>
// kernel: tpu_custom_call.1
$region0: #{tpu_custom_call.1}
  #allocation0 [shape = 'u32[]', space=smem, size = 0x4, offset = 0x4, fixed_abs, tag = 'smem constant byte address 0x4 - core index']
  #allocation1 [shape = 'u32[144,128]{1,0:T(1,128)}', space=vmem, size = 0x12000, scoped, tag = 'internal scratch']
  #allocation2 [shape = 'f32[128,32]{1,0:T(8,128)}', space=vmem, size = 0x10000, scoped, tag = 'scratch operand']
  %s0 = inlined_call_operand.vmem [shape: bf16[128,128], index: 0, kind: input, shape index: {}]
  %s1 = inlined_call_operand.vmem [shape: bf16[128,32], index: 1, kind: input, shape index: {}]
  %s2 = inlined_call_operand.vmem [shape: f32[1,32], index: 2, kind: input, shape index: {}]
  %s3 = inlined_call_operand.vmem [shape: bf16[128,32], index: 3, kind: output, shape index: {}]
  %s4 = sld [smem:[#allocation0]]
  $region30: #{tpu_custom_call.1} parent=0
    _
  %s6 = ssub.s32 1, %s4
  %s7 = scalar_select 0, %s6, %s4
  // Predicated region
  $region2: #{tpu_custom_call.1} parent=0 // pred_check
    _
  $region3: #{tpu_custom_call.1} parent=0 // pred_check_branch
    %9 = sbr.rel (0) target = $region5
  $region4: #{tpu_custom_call.1} parent=0 // pred_region
    _
  $region5: #{tpu_custom_call.1} parent=0 // pred_fallthru
    _
  // Predicated region
  $region6: #{tpu_custom_call.1} parent=0 // pred_check
    _
  $region7: #{tpu_custom_call.1} parent=0 // pred_check_branch
    %11 = sbr.rel (0) target = $region9
  $region8: #{tpu_custom_call.1} parent=0 // pred_region
    _
  $region9: #{tpu_custom_call.1} parent=0 // pred_fallthru
    _
  // Predicated region
  $region10: #{tpu_custom_call.1} parent=0 // pred_check
    _
  $region11: #{tpu_custom_call.1} parent=0 // pred_check_branch
    %13 = sbr.rel (0) target = $region13
  $region12: #{tpu_custom_call.1} parent=0 // pred_region
    _
  $region13: #{tpu_custom_call.1} parent=0 // pred_fallthru
    _
  %p15 = scmp.eq.s32.totalorder 0, 0
  // Predicated region
  $region14: #{tpu_custom_call.1} parent=0 // pred_check
    %p16 = pneg %p15
  $region15: #{tpu_custom_call.1} parent=0 // pred_check_branch
    %18 = sbr.rel (%p16) target = $region17
  $region16: #{tpu_custom_call.1} parent=0 // pred_region
    %vm19 = vcmask 261120
    %20 = vst.msk [vmem:[#allocation2] sm:$0xff] %vm19, 0.0
    %21 = vst.msk [vmem:[#allocation2 + $0x8] sm:$0xff] %vm19, 0.0
    %22 = vst.msk [vmem:[#allocation2 + $0x10] sm:$0xff] %vm19, 0.0
    %23 = vst.msk [vmem:[#allocation2 + $0x18] sm:$0xff] %vm19, 0.0
    %24 = vst.msk [vmem:[#allocation2 + $0x20] sm:$0xff] %vm19, 0.0
    %25 = vst.msk [vmem:[#allocation2 + $0x28] sm:$0xff] %vm19, 0.0
    %26 = vst.msk [vmem:[#allocation2 + $0x30] sm:$0xff] %vm19, 0.0
    %27 = vst.msk [vmem:[#allocation2 + $0x38] sm:$0xff] %vm19, 0.0
    %28 = vst.msk [vmem:[#allocation2 + $0x40] sm:$0xff] %vm19, 0.0
    %29 = vst.msk [vmem:[#allocation2 + $0x48] sm:$0xff] %vm19, 0.0
    %30 = vst.msk [vmem:[#allocation2 + $0x50] sm:$0xff] %vm19, 0.0
    %31 = vst.msk [vmem:[#allocation2 + $0x58] sm:$0xff] %vm19, 0.0
    %32 = vst.msk [vmem:[#allocation2 + $0x60] sm:$0xff] %vm19, 0.0
    %33 = vst.msk [vmem:[#allocation2 + $0x68] sm:$0xff] %vm19, 0.0
    %34 = vst.msk [vmem:[#allocation2 + $0x70] sm:$0xff] %vm19, 0.0
    %35 = vst.msk [vmem:[#allocation2 + $0x78] sm:$0xff] %vm19, 0.0
  $region17: #{tpu_custom_call.1} parent=0 // pred_fallthru
    _
  %v36 = vld [vmem:[#allocation2] sm:$0xff]
  %v37 = vld [vmem:[#allocation2 + $0x8] sm:$0xff]
  %v38 = vld [vmem:[#allocation2 + $0x10] sm:$0xff]
  %v39 = vld [vmem:[#allocation2 + $0x18] sm:$0xff]
  %v40 = vld [vmem:[#allocation2 + $0x20] sm:$0xff]
  %v41 = vld [vmem:[#allocation2 + $0x28] sm:$0xff]
  %v42 = vld [vmem:[#allocation2 + $0x30] sm:$0xff]
  %v43 = vld [vmem:[#allocation2 + $0x38] sm:$0xff]
  %v44 = vld [vmem:[#allocation2 + $0x40] sm:$0xff]
  %v45 = vld [vmem:[#allocation2 + $0x48] sm:$0xff]
  %v46 = vld [vmem:[#allocation2 + $0x50] sm:$0xff]
  %v47 = vld [vmem:[#allocation2 + $0x58] sm:$0xff]
  %v48 = vld [vmem:[#allocation2 + $0x60] sm:$0xff]
  %v49 = vld [vmem:[#allocation2 + $0x68] sm:$0xff]
  %v50 = vld [vmem:[#allocation2 + $0x70] sm:$0xff]
  %v51 = vld [vmem:[#allocation2 + $0x78] sm:$0xff]
  %v52 = vld [vmem:[%s0] sm:$0xf]
  %v53 = vld [vmem:[%s0 + $0x4] sm:$0xf]
  %v54 = vld [vmem:[%s0 + $0x8] sm:$0xf]
  %v55 = vld [vmem:[%s0 + $0xc] sm:$0xf]
  %v56 = vld [vmem:[%s0 + $0x10] sm:$0xf]
  %v57 = vld [vmem:[%s0 + $0x14] sm:$0xf]
  %v58 = vld [vmem:[%s0 + $0x18] sm:$0xf]
  %v59 = vld [vmem:[%s0 + $0x1c] sm:$0xf]
  %v60 = vld [vmem:[%s0 + $0x20] sm:$0xf]
  %v61 = vld [vmem:[%s0 + $0x24] sm:$0xf]
  %v62 = vld [vmem:[%s0 + $0x28] sm:$0xf]
  %v63 = vld [vmem:[%s0 + $0x2c] sm:$0xf]
  %v64 = vld [vmem:[%s0 + $0x30] sm:$0xf]
  %v65 = vld [vmem:[%s0 + $0x34] sm:$0xf]
  %v66 = vld [vmem:[%s0 + $0x38] sm:$0xf]
  %v67 = vld [vmem:[%s0 + $0x3c] sm:$0xf]
  %v68 = vld [vmem:[%s1] sm:$0xf]
  %v69 = vld [vmem:[%s1 + $0x4] sm:$0xf]
  %v70 = vld [vmem:[%s1 + $0x8] sm:$0xf]
  %v71 = vld [vmem:[%s1 + $0xc] sm:$0xf]
  %v72 = vld [vmem:[%s1 + $0x10] sm:$0xf]
  %v73 = vld [vmem:[%s1 + $0x14] sm:$0xf]
  %v74 = vld [vmem:[%s1 + $0x18] sm:$0xf]
  %v75 = vld [vmem:[%s1 + $0x1c] sm:$0xf]
  %v76 = vld [vmem:[%s1 + $0x20] sm:$0xf]
  %v77 = vld [vmem:[%s1 + $0x24] sm:$0xf]
  %v78 = vld [vmem:[%s1 + $0x28] sm:$0xf]
  %v79 = vld [vmem:[%s1 + $0x2c] sm:$0xf]
  %v80 = vld [vmem:[%s1 + $0x30] sm:$0xf]
  %v81 = vld [vmem:[%s1 + $0x34] sm:$0xf]
  %v82 = vld [vmem:[%s1 + $0x38] sm:$0xf]
  %v83 = vld [vmem:[%s1 + $0x3c] sm:$0xf]
  %v100 = vunpack.c.l.b16 %v52
  %v101 = vunpack.c.l.b16 %v53
  %v102 = vunpack.c.l.b16 %v54
  %v103 = vunpack.c.l.b16 %v55
  %v104 = vunpack.c.l.b16 %v56
  %v105 = vunpack.c.l.b16 %v57
  %v106 = vunpack.c.l.b16 %v58
  %v107 = vunpack.c.l.b16 %v59
  %v108 = vunpack.c.l.b16 %v60
  %v109 = vunpack.c.l.b16 %v61
  %v110 = vunpack.c.l.b16 %v62
  %v111 = vunpack.c.l.b16 %v63
  %v112 = vunpack.c.l.b16 %v64
  %v113 = vunpack.c.l.b16 %v65
  %v114 = vunpack.c.l.b16 %v66
  %v115 = vunpack.c.l.b16 %v67
  %v116 = vpack.c.b16 %v101, %v100
  %v117 = vpack.c.b16 %v103, %v102
  %v118 = vpack.c.b16 %v105, %v104
  %v119 = vpack.c.b16 %v107, %v106
  %v120 = vpack.c.b16 %v109, %v108
  %v121 = vpack.c.b16 %v111, %v110
  %v122 = vpack.c.b16 %v113, %v112
  %v123 = vpack.c.b16 %v115, %v114
  %v148 = vunpack.c.l.b16 %v68
  %v149 = vunpack.c.l.b16 %v69
  %v150 = vunpack.c.l.b16 %v70
  %v151 = vunpack.c.l.b16 %v71
  %v152 = vunpack.c.l.b16 %v72
  %v153 = vunpack.c.l.b16 %v73
  %v154 = vunpack.c.l.b16 %v74
  %v155 = vunpack.c.l.b16 %v75
  %v156 = vunpack.c.l.b16 %v76
  %v157 = vunpack.c.l.b16 %v77
  %v158 = vunpack.c.l.b16 %v78
  %v159 = vunpack.c.l.b16 %v79
  %v160 = vunpack.c.l.b16 %v80
  %v161 = vunpack.c.l.b16 %v81
  %v162 = vunpack.c.l.b16 %v82
  %v163 = vunpack.c.l.b16 %v83
  %v164 = vpack.c.b16 %v149, %v148
  %v165 = vpack.c.b16 %v151, %v150
  %v166 = vpack.c.b16 %v153, %v152
  %v167 = vpack.c.b16 %v155, %v154
  %v168 = vpack.c.b16 %v157, %v156
  %v169 = vpack.c.b16 %v159, %v158
  %v170 = vpack.c.b16 %v161, %v160
  %v171 = vpack.c.b16 %v163, %v162
  %180 = vmatprep.subr.bf16.mxu0 0
  %181 = vmatpush1.bf16.msra.mxu0 %v171
  %182 = vmatprep.subr.bf16.mxu0 0
  %183 = vmatpush1.bf16.msra.mxu0 %v170
  %184 = vmatprep.subr.bf16.mxu0 0
  %185 = vmatpush1.bf16.msra.mxu0 %v169
  %186 = vmatprep.subr.bf16.mxu0 0
  %187 = vmatpush1.bf16.msra.mxu0 %v168
  %188 = vmatprep.subr.bf16.mxu0 0
  %189 = vmatpush1.bf16.msra.mxu0 %v167
  %190 = vmatprep.subr.bf16.mxu0 0
  %191 = vmatpush1.bf16.msra.mxu0 %v166
  %192 = vmatprep.subr.bf16.mxu0 0
  %193 = vmatpush1.bf16.msra.mxu0 %v165
  %194 = vmatprep.subr.bf16.mxu0 0
  %195 = vmatpush1.bf16.msra.mxu0 %v164
  %196 = vmatprep.subr.bf16.mxu0 0
  %197 = vmatpush2.bf16.msra.mxu0 0
  %198 = vmatprep.subr.bf16.mxu0 0
  %199 = vmatpush2.bf16.msra.mxu0 0
  %200 = vmatprep.subr.bf16.mxu0 0
  %201 = vmatpush2.bf16.msra.mxu0 0
  %202 = vmatprep.subr.bf16.mxu0 0
  %203 = vmatpush2.bf16.msra.mxu0 0
  %204 = vmatprep.subr.bf16.mxu0 0
  %205 = vmatpush2.bf16.msra.mxu0 0
  %206 = vmatprep.subr.bf16.mxu0 0
  %207 = vmatpush2.bf16.msra.mxu0 0
  %208 = vmatprep.subr.bf16.mxu0 0
  %209 = vmatpush2.bf16.msra.mxu0 0
  %210 = vmatprep.subr.bf16.mxu0 0
  %211 = vmatpush2.bf16.msra.mxu0 0
  %212 = vmatprep.mubr.bf16.mxu0 0
  %213 = vmatmul.mubr.bf16.gmra.mxu0 %v116
  %v214 = vpop.f32.mrf.mxu0
  %v215 = vadd.f32 0.0, %v214
  %v216 = vpop.f32.mrf.mxu0
  %v217 = vpop.f32.mrf.mxu0
  %v218 = vadd.f32 0.0, %v217
  %v219 = vpop.f32.mrf.mxu0
  %220 = vmatprep.mubr.bf16.mxu0 0
  %221 = vmatmul.mubr.bf16.gmra.mxu0 %v117
  %v222 = vpop.f32.mrf.mxu0
  %v223 = vadd.f32 0.0, %v222
  %v224 = vpop.f32.mrf.mxu0
  %v225 = vpop.f32.mrf.mxu0
  %v226 = vadd.f32 0.0, %v225
  %v227 = vpop.f32.mrf.mxu0
  %228 = vmatprep.mubr.bf16.mxu0 0
  %229 = vmatmul.mubr.bf16.gmra.mxu0 %v118
  %v230 = vpop.f32.mrf.mxu0
  %v231 = vadd.f32 0.0, %v230
  %v232 = vpop.f32.mrf.mxu0
  %v233 = vpop.f32.mrf.mxu0
  %v234 = vadd.f32 0.0, %v233
  %v235 = vpop.f32.mrf.mxu0
  %236 = vmatprep.mubr.bf16.mxu0 0
  %237 = vmatmul.mubr.bf16.gmra.mxu0 %v119
  %v238 = vpop.f32.mrf.mxu0
  %v239 = vadd.f32 0.0, %v238
  %v240 = vpop.f32.mrf.mxu0
  %v241 = vpop.f32.mrf.mxu0
  %v242 = vadd.f32 0.0, %v241
  %v243 = vpop.f32.mrf.mxu0
  %244 = vmatprep.mubr.bf16.mxu0 0
  %245 = vmatmul.mubr.bf16.gmra.mxu0 %v120
  %v246 = vpop.f32.mrf.mxu0
  %v247 = vadd.f32 0.0, %v246
  %v248 = vpop.f32.mrf.mxu0
  %v249 = vpop.f32.mrf.mxu0
  %v250 = vadd.f32 0.0, %v249
  %v251 = vpop.f32.mrf.mxu0
  %252 = vmatprep.mubr.bf16.mxu0 0
  %253 = vmatmul.mubr.bf16.gmra.mxu0 %v121
  %v254 = vpop.f32.mrf.mxu0
  %v255 = vadd.f32 0.0, %v254
  %v256 = vpop.f32.mrf.mxu0
  %v257 = vpop.f32.mrf.mxu0
  %v258 = vadd.f32 0.0, %v257
  %v259 = vpop.f32.mrf.mxu0
  %260 = vmatprep.mubr.bf16.mxu0 0
  %261 = vmatmul.mubr.bf16.gmra.mxu0 %v122
  %v262 = vpop.f32.mrf.mxu0
  %v263 = vadd.f32 0.0, %v262
  %v264 = vpop.f32.mrf.mxu0
  %v265 = vpop.f32.mrf.mxu0
  %v266 = vadd.f32 0.0, %v265
  %v267 = vpop.f32.mrf.mxu0
  %268 = vmatprep.mubr.bf16.mxu0 0
  %269 = vmatmul.mubr.bf16.gmra.mxu0 %v123
  %v270 = vpop.f32.mrf.mxu0
  %v271 = vadd.f32 0.0, %v270
  %v272 = vpop.f32.mrf.mxu0
  %v273 = vpop.f32.mrf.mxu0
  %v274 = vadd.f32 0.0, %v273
  %v275 = vpop.f32.mrf.mxu0
  %276 = vdwg.mxu0
  %v277 = vadd.f32 %v36, %v215
  %v278 = vadd.f32 %v37, %v218
  %v279 = vadd.f32 %v38, %v223
  %v280 = vadd.f32 %v39, %v226
  %v281 = vadd.f32 %v40, %v231
  %v282 = vadd.f32 %v41, %v234
  %v283 = vadd.f32 %v42, %v239
  %v284 = vadd.f32 %v43, %v242
  %v285 = vadd.f32 %v44, %v247
  %v286 = vadd.f32 %v45, %v250
  %v287 = vadd.f32 %v46, %v255
  %v288 = vadd.f32 %v47, %v258
  %v289 = vadd.f32 %v48, %v263
  %v290 = vadd.f32 %v49, %v266
  %v291 = vadd.f32 %v50, %v271
  %v292 = vadd.f32 %v51, %v274
  %vm293 = vcmask 261120
  %294 = vst.msk [vmem:[#allocation2] sm:$0xff] %vm293, %v277
  %295 = vst.msk [vmem:[#allocation2 + $0x8] sm:$0xff] %vm293, %v278
  %296 = vst.msk [vmem:[#allocation2 + $0x10] sm:$0xff] %vm293, %v279
  %297 = vst.msk [vmem:[#allocation2 + $0x18] sm:$0xff] %vm293, %v280
  %298 = vst.msk [vmem:[#allocation2 + $0x20] sm:$0xff] %vm293, %v281
  %299 = vst.msk [vmem:[#allocation2 + $0x28] sm:$0xff] %vm293, %v282
  %300 = vst.msk [vmem:[#allocation2 + $0x30] sm:$0xff] %vm293, %v283
  %301 = vst.msk [vmem:[#allocation2 + $0x38] sm:$0xff] %vm293, %v284
  %302 = vst.msk [vmem:[#allocation2 + $0x40] sm:$0xff] %vm293, %v285
  %303 = vst.msk [vmem:[#allocation2 + $0x48] sm:$0xff] %vm293, %v286
  %304 = vst.msk [vmem:[#allocation2 + $0x50] sm:$0xff] %vm293, %v287
  %305 = vst.msk [vmem:[#allocation2 + $0x58] sm:$0xff] %vm293, %v288
  %306 = vst.msk [vmem:[#allocation2 + $0x60] sm:$0xff] %vm293, %v289
  %307 = vst.msk [vmem:[#allocation2 + $0x68] sm:$0xff] %vm293, %v290
  %308 = vst.msk [vmem:[#allocation2 + $0x70] sm:$0xff] %vm293, %v291
  %309 = vst.msk [vmem:[#allocation2 + $0x78] sm:$0xff] %vm293, %v292
  // Predicated region
  $region18: #{tpu_custom_call.1} parent=0 // pred_check
    %p310 = pneg %p15
  $region19: #{tpu_custom_call.1} parent=0 // pred_check_branch
    %312 = sbr.rel (%p310) target = $region21
  $region20: #{tpu_custom_call.1} parent=0 // pred_region
    %v313 = vld [vmem:[#allocation2] sm:$0xff]
    %v314 = vld [vmem:[#allocation2 + $0x8] sm:$0xff]
    %v315 = vld [vmem:[#allocation2 + $0x10] sm:$0xff]
    %v316 = vld [vmem:[#allocation2 + $0x18] sm:$0xff]
    %v317 = vld [vmem:[#allocation2 + $0x20] sm:$0xff]
    %v318 = vld [vmem:[#allocation2 + $0x28] sm:$0xff]
    %v319 = vld [vmem:[#allocation2 + $0x30] sm:$0xff]
    %v320 = vld [vmem:[#allocation2 + $0x38] sm:$0xff]
    %v321 = vld [vmem:[#allocation2 + $0x40] sm:$0xff]
    %v322 = vld [vmem:[#allocation2 + $0x48] sm:$0xff]
    %v323 = vld [vmem:[#allocation2 + $0x50] sm:$0xff]
    %v324 = vld [vmem:[#allocation2 + $0x58] sm:$0xff]
    %v325 = vld [vmem:[#allocation2 + $0x60] sm:$0xff]
    %v326 = vld [vmem:[#allocation2 + $0x68] sm:$0xff]
    %v327 = vld [vmem:[#allocation2 + $0x70] sm:$0xff]
    %v328 = vld [vmem:[#allocation2 + $0x78] sm:$0xff]
    %v329 = vld [vmem:[%s2] sm:$0x1]
    %v331 = vlaneseq
    %v332 = vshrl.u32 %v331, 7
    %v333 = vsub.s32 0, %v332
    %v334 = vrot.slane %v329, %v333
    %v336 = vadd.f32 %v313, %v334
    %v337 = vadd.f32 %v314, %v334
    %v338 = vadd.f32 %v315, %v334
    %v339 = vadd.f32 %v316, %v334
    %v340 = vadd.f32 %v317, %v334
    %v341 = vadd.f32 %v318, %v334
    %v342 = vadd.f32 %v319, %v334
    %v343 = vadd.f32 %v320, %v334
    %v344 = vadd.f32 %v321, %v334
    %v345 = vadd.f32 %v322, %v334
    %v346 = vadd.f32 %v323, %v334
    %v347 = vadd.f32 %v324, %v334
    %v348 = vadd.f32 %v325, %v334
    %v349 = vadd.f32 %v326, %v334
    %v350 = vadd.f32 %v327, %v334
    %v351 = vadd.f32 %v328, %v334
    %vm352 = vcmp.gt.f32.partialorder %v336, 0.0
    %vm353 = vcmp.gt.f32.partialorder %v337, 0.0
    %vm354 = vcmp.gt.f32.partialorder %v338, 0.0
    %vm355 = vcmp.gt.f32.partialorder %v339, 0.0
    %vm356 = vcmp.gt.f32.partialorder %v340, 0.0
    %vm357 = vcmp.gt.f32.partialorder %v341, 0.0
    %vm358 = vcmp.gt.f32.partialorder %v342, 0.0
    %vm359 = vcmp.gt.f32.partialorder %v343, 0.0
    %vm360 = vcmp.gt.f32.partialorder %v344, 0.0
    %vm361 = vcmp.gt.f32.partialorder %v345, 0.0
    %vm362 = vcmp.gt.f32.partialorder %v346, 0.0
    %vm363 = vcmp.gt.f32.partialorder %v347, 0.0
    %vm364 = vcmp.gt.f32.partialorder %v348, 0.0
    %vm365 = vcmp.gt.f32.partialorder %v349, 0.0
    %vm366 = vcmp.gt.f32.partialorder %v350, 0.0
    %vm367 = vcmp.gt.f32.partialorder %v351, 0.0
    %v368 = vmul.f32 %v336, 0.25
    %v369 = vmul.f32 %v337, 0.25
    %v370 = vmul.f32 %v338, 0.25
    %v371 = vmul.f32 %v339, 0.25
    %v372 = vmul.f32 %v340, 0.25
    %v373 = vmul.f32 %v341, 0.25
    %v374 = vmul.f32 %v342, 0.25
    %v375 = vmul.f32 %v343, 0.25
    %v376 = vmul.f32 %v344, 0.25
    %v377 = vmul.f32 %v345, 0.25
    %v378 = vmul.f32 %v346, 0.25
    %v379 = vmul.f32 %v347, 0.25
    %v380 = vmul.f32 %v348, 0.25
    %v381 = vmul.f32 %v349, 0.25
    %v382 = vmul.f32 %v350, 0.25
    %v383 = vmul.f32 %v351, 0.25
    %v384 = vsel %vm352, %v336, %v368
    %v385 = vsel %vm353, %v337, %v369
    %v386 = vsel %vm354, %v338, %v370
    %v387 = vsel %vm355, %v339, %v371
    %v388 = vsel %vm356, %v340, %v372
    %v389 = vsel %vm357, %v341, %v373
    %v390 = vsel %vm358, %v342, %v374
    %v391 = vsel %vm359, %v343, %v375
    %v392 = vsel %vm360, %v344, %v376
    %v393 = vsel %vm361, %v345, %v377
    %v394 = vsel %vm362, %v346, %v378
    %v395 = vsel %vm363, %v347, %v379
    %v396 = vsel %vm364, %v348, %v380
    %v397 = vsel %vm365, %v349, %v381
    %v398 = vsel %vm366, %v350, %v382
    %v399 = vsel %vm367, %v351, %v383
    %v400 = vpack.c.bf16 %v385, %v384
    %v401 = vpack.c.bf16 %v387, %v386
    %v402 = vpack.c.bf16 %v389, %v388
    %v403 = vpack.c.bf16 %v391, %v390
    %v404 = vpack.c.bf16 %v393, %v392
    %v405 = vpack.c.bf16 %v395, %v394
    %v406 = vpack.c.bf16 %v397, %v396
    %v407 = vpack.c.bf16 %v399, %v398
    %v416 = vunpack.c.l.b16 %v400
    %v417 = vunpack.c.h.b16 %v400
    %v418 = vunpack.c.l.b16 %v401
    %v419 = vunpack.c.h.b16 %v401
    %v420 = vunpack.c.l.b16 %v402
    %v421 = vunpack.c.h.b16 %v402
    %v422 = vunpack.c.l.b16 %v403
    %v423 = vunpack.c.h.b16 %v403
    %v424 = vunpack.c.l.b16 %v404
    %v425 = vunpack.c.h.b16 %v404
    %v426 = vunpack.c.l.b16 %v405
    %v427 = vunpack.c.h.b16 %v405
    %v428 = vunpack.c.l.b16 %v406
    %v429 = vunpack.c.h.b16 %v406
    %v430 = vunpack.c.l.b16 %v407
    %v431 = vunpack.c.h.b16 %v407
    %v432 = vpack.c.b16 %v416, %v416
    %v433 = vpack.c.b16 %v417, %v417
    %v434 = vpack.c.b16 %v418, %v418
    %v435 = vpack.c.b16 %v419, %v419
    %v436 = vpack.c.b16 %v420, %v420
    %v437 = vpack.c.b16 %v421, %v421
    %v438 = vpack.c.b16 %v422, %v422
    %v439 = vpack.c.b16 %v423, %v423
    %v440 = vpack.c.b16 %v424, %v424
    %v441 = vpack.c.b16 %v425, %v425
    %v442 = vpack.c.b16 %v426, %v426
    %v443 = vpack.c.b16 %v427, %v427
    %v444 = vpack.c.b16 %v428, %v428
    %v445 = vpack.c.b16 %v429, %v429
    %v446 = vpack.c.b16 %v430, %v430
    %v447 = vpack.c.b16 %v431, %v431
    %vm464 = vcmask 257024
    %465 = vst.msk [vmem:[%s3] sm:$0xf] %vm464, %v432
    %466 = vst.msk [vmem:[%s3 + $0x4] sm:$0xf] %vm464, %v433
    %467 = vst.msk [vmem:[%s3 + $0x8] sm:$0xf] %vm464, %v434
    %468 = vst.msk [vmem:[%s3 + $0xc] sm:$0xf] %vm464, %v435
    %469 = vst.msk [vmem:[%s3 + $0x10] sm:$0xf] %vm464, %v436
    %470 = vst.msk [vmem:[%s3 + $0x14] sm:$0xf] %vm464, %v437
    %471 = vst.msk [vmem:[%s3 + $0x18] sm:$0xf] %vm464, %v438
    %472 = vst.msk [vmem:[%s3 + $0x1c] sm:$0xf] %vm464, %v439
    %473 = vst.msk [vmem:[%s3 + $0x20] sm:$0xf] %vm464, %v440
    %474 = vst.msk [vmem:[%s3 + $0x24] sm:$0xf] %vm464, %v441
    %475 = vst.msk [vmem:[%s3 + $0x28] sm:$0xf] %vm464, %v442
    %476 = vst.msk [vmem:[%s3 + $0x2c] sm:$0xf] %vm464, %v443
    %477 = vst.msk [vmem:[%s3 + $0x30] sm:$0xf] %vm464, %v444
    %478 = vst.msk [vmem:[%s3 + $0x34] sm:$0xf] %vm464, %v445
    %479 = vst.msk [vmem:[%s3 + $0x38] sm:$0xf] %vm464, %v446
    %480 = vst.msk [vmem:[%s3 + $0x3c] sm:$0xf] %vm464, %v447
  $region21: #{tpu_custom_call.1} parent=0 // pred_fallthru
    _
  // Predicated region
  $region22: #{tpu_custom_call.1} parent=0 // pred_check
    _
  $region23: #{tpu_custom_call.1} parent=0 // pred_check_branch
    %482 = sbr.rel (0) target = $region25
  $region24: #{tpu_custom_call.1} parent=0 // pred_region
    _
  $region25: #{tpu_custom_call.1} parent=0 // pred_fallthru
    _
  // Predicated region
  $region26: #{tpu_custom_call.1} parent=0 // pred_check
    _
  $region27: #{tpu_custom_call.1} parent=0 // pred_check_branch
    %484 = sbr.rel (0) target = $region29
  $region28: #{tpu_custom_call.1} parent=0 // pred_region
    _
  $region29: #{tpu_custom_call.1} parent=0 // pred_fallthru
    _

</llo_original>
